<compile_context>
chip_gen: v5e
topology: v5e:2x2
jax: 0.10.0
libtpu: 0.0.40
codegen_flags: <defaults>
</compile_context>

<pallas_src>
import jax
import jax.numpy as jnp
from jax.experimental import pallas as pl
from jax.experimental.pallas import tpu as pltpu


TILE_B = 128   # max batch rows per grid step (full MXU rows)
N_PAD = 128    # lane-dense padded width of the final (10-wide) layer


def ann_kernel(x_ref, w1_ref, b1_ref, w2_ref, b2_ref, w3_ref, b3_ref, out_ref):
    # Fused 3-layer MLP on one (tile_b, 64) batch tile:
    #   relu(x@W1+b1) -> relu(h@W2+b2) -> h@W3p+b3p   (W3p/b3p zero-padded to 128 lanes)
    x = x_ref[...]                                                      # (tile_b, 64)
    h1 = jnp.dot(x, w1_ref[...], preferred_element_type=jnp.float32)   # (tile_b, 128)
    h1 = jnp.maximum(h1 + b1_ref[...], 0.0)
    h2 = jnp.dot(h1, w2_ref[...], preferred_element_type=jnp.float32)  # (tile_b, 64)
    h2 = jnp.maximum(h2 + b2_ref[...], 0.0)
    h3 = jnp.dot(h2, w3_ref[...], preferred_element_type=jnp.float32)  # (tile_b, 128)
    out_ref[...] = (h3 + b3_ref[...]).astype(out_ref.dtype)


def _round_up(n, m):
    return ((n + m - 1) // m) * m


def ann_forward(x, params, *, max_tile_b=TILE_B):
    w1, b1, w2, b2, w3, b3 = params
    B, d_in = x.shape
    n_out = w3.shape[1]

    # Zero-pad the last layer to a lane-dense (multiple-of-128) output width.
    w3p = jnp.zeros((w3.shape[0], N_PAD), w3.dtype).at[:, :n_out].set(w3)
    b3p = jnp.zeros((b3.shape[0], N_PAD), b3.dtype).at[:, :n_out].set(b3)

    # Adaptive batch tile: multiple of 8 sublanes, capped at max_tile_b.
    tile_b = min(max_tile_b, _round_up(B, 8))
    n_tiles = pl.cdiv(B, tile_b)
    b_pad = n_tiles * tile_b
    xp = jnp.pad(x, ((0, b_pad - B), (0, 0))) if b_pad != B else x

    # Weights/biases: full-block, same block every grid step -> fetched once, VMEM-resident.
    def resident(arr):
        return pl.BlockSpec(arr.shape, lambda i: (0, 0))

    flops = 2 * b_pad * (d_in * w1.shape[1]
                         + w2.shape[0] * w2.shape[1]
                         + w3p.shape[0] * N_PAD)
    bytes_accessed = 4 * (xp.size + b_pad * N_PAD
                          + w1.size + b1.size + w2.size + b2.size
                          + w3p.size + b3p.size)

    out = pl.pallas_call(
        ann_kernel,
        out_shape=jax.ShapeDtypeStruct((b_pad, N_PAD), jnp.float32),
        grid=(n_tiles,),
        in_specs=[
            pl.BlockSpec((tile_b, d_in), lambda i: (i, 0)),   # activation tile, pipelined
            resident(w1), resident(b1),
            resident(w2), resident(b2),
            resident(w3p), resident(b3p),
        ],
        out_specs=pl.BlockSpec((tile_b, N_PAD), lambda i: (i, 0)),
        compiler_params=pltpu.CompilerParams(
            dimension_semantics=("parallel",),                # megacore-shard batch
        ),
        cost_estimate=pl.CostEstimate(
            flops=flops, transcendentals=0, bytes_accessed=bytes_accessed),
    )(xp, w1, b1, w2, b2, w3p, b3p)

    return out[:B, :n_out]


def init_params(key):
    # Deterministic init mimicking nn.Linear's U(-1/sqrt(in), 1/sqrt(in)).
    dims = [(64, 128), (128, 64), (64, 10)]
    params = []
    for i, (d_in, d_out) in enumerate(dims):
        kw, kb = jax.random.split(jax.random.fold_in(key, i))
        bound = 1.0 / jnp.sqrt(jnp.float32(d_in))
        w = jax.random.uniform(kw, (d_in, d_out), jnp.float32, -bound, bound)
        b = jax.random.uniform(kb, (1, d_out), jnp.float32, -bound, bound)
        params += [w, b]
    return tuple(params)


def reference_forward(x, params):
    w1, b1, w2, b2, w3, b3 = params
    h = jnp.maximum(x @ w1 + b1, 0.0)
    h = jnp.maximum(h @ w2 + b2, 0.0)
    return h @ w3 + b3


if __name__ == "__main__":
    key = jax.random.PRNGKey(0)
    kx, kp = jax.random.split(key)
    B = 8  # small example batch; wrapper pads to a sublane multiple internally
    x = jax.random.normal(kx, (B, 64), jnp.float32)
    params = init_params(kp)

    out = jax.block_until_ready(ann_forward(x, params))
    ref = reference_forward(x, params)

    assert out.shape == (B, 10)
    assert jnp.allclose(out, ref, atol=1e-5, rtol=1e-5)
    print("KERNEL_OK")
</pallas_src>

<mosaic_0001>
module attributes {stable_mosaic.version = 11 : i64} {
  func.func @ann_kernel(%arg0: i32, %arg1: memref<8x64xf32, #tpu.memory_space<vmem>>, %arg2: memref<64x128xf32, #tpu.memory_space<vmem>>, %arg3: memref<1x128xf32, #tpu.memory_space<vmem>>, %arg4: memref<128x64xf32, #tpu.memory_space<vmem>>, %arg5: memref<1x64xf32, #tpu.memory_space<vmem>>, %arg6: memref<64x128xf32, #tpu.memory_space<vmem>>, %arg7: memref<1x128xf32, #tpu.memory_space<vmem>>, %arg8: memref<8x128xf32, #tpu.memory_space<vmem>>) attributes {dimension_semantics = [#tpu.dimension_semantics<parallel>], iteration_bounds = array<i64: 1>, scalar_prefetch = 0 : i64, scratch_operands = 0 : i64, tpu.core_type = #tpu.core_type<tc>, window_params = [{transform_indices = @transform_0, window_bounds = array<i64: 8, 64>}, {pipeline_mode = #tpu.pipeline_mode<synchronous>, transform_indices = @transform_1, window_bounds = array<i64: 64, 128>}, {pipeline_mode = #tpu.pipeline_mode<synchronous>, transform_indices = @transform_2, window_bounds = array<i64: 1, 128>}, {pipeline_mode = #tpu.pipeline_mode<synchronous>, transform_indices = @transform_3, window_bounds = array<i64: 128, 64>}, {pipeline_mode = #tpu.pipeline_mode<synchronous>, transform_indices = @transform_4, window_bounds = array<i64: 1, 64>}, {pipeline_mode = #tpu.pipeline_mode<synchronous>, transform_indices = @transform_5, window_bounds = array<i64: 64, 128>}, {pipeline_mode = #tpu.pipeline_mode<synchronous>, transform_indices = @transform_6, window_bounds = array<i64: 1, 128>}, {transform_indices = @transform_7, window_bounds = array<i64: 8, 128>}]} {
    %c0 = arith.constant 0 : index
    %c0_0 = arith.constant 0 : index
    %0 = vector.load %arg1[%c0, %c0_0] : memref<8x64xf32, #tpu.memory_space<vmem>>, vector<8x64xf32>
    %c0_1 = arith.constant 0 : index
    %c0_2 = arith.constant 0 : index
    %1 = vector.load %arg2[%c0_1, %c0_2] : memref<64x128xf32, #tpu.memory_space<vmem>>, vector<64x128xf32>
    %cst = arith.constant dense<0.000000e+00> : vector<8x128xf32>
    %2 = tpu.matmul %0, %1, %cst {dimension_numbers = #tpu.dot_dimension_numbers<[1], [0], [0], [1], [0, 0, 1, 1], [], []>} : vector<8x64xf32>, vector<64x128xf32>, vector<8x128xf32> -> vector<8x128xf32>
    %c0_3 = arith.constant 0 : index
    %c0_4 = arith.constant 0 : index
    %3 = vector.load %arg3[%c0_3, %c0_4] : memref<1x128xf32, #tpu.memory_space<vmem>>, vector<1x128xf32>
    %4 = vector.broadcast %3 : vector<1x128xf32> to vector<8x128xf32>
    %5 = arith.addf %2, %4 : vector<8x128xf32>
    %cst_5 = arith.constant 0.000000e+00 : f32
    %6 = vector.broadcast %cst_5 : f32 to vector<8x128xf32>
    %7 = arith.maximumf %5, %6 : vector<8x128xf32>
    %c0_6 = arith.constant 0 : index
    %c0_7 = arith.constant 0 : index
    %8 = vector.load %arg4[%c0_6, %c0_7] : memref<128x64xf32, #tpu.memory_space<vmem>>, vector<128x64xf32>
    %cst_8 = arith.constant dense<0.000000e+00> : vector<8x64xf32>
    %9 = tpu.matmul %7, %8, %cst_8 {dimension_numbers = #tpu.dot_dimension_numbers<[1], [0], [0], [1], [0, 0, 1, 1], [], []>} : vector<8x128xf32>, vector<128x64xf32>, vector<8x64xf32> -> vector<8x64xf32>
    %c0_9 = arith.constant 0 : index
    %c0_10 = arith.constant 0 : index
    %10 = vector.load %arg5[%c0_9, %c0_10] : memref<1x64xf32, #tpu.memory_space<vmem>>, vector<1x64xf32>
    %11 = vector.broadcast %10 : vector<1x64xf32> to vector<8x64xf32>
    %12 = arith.addf %9, %11 : vector<8x64xf32>
    %cst_11 = arith.constant 0.000000e+00 : f32
    %13 = vector.broadcast %cst_11 : f32 to vector<8x64xf32>
    %14 = arith.maximumf %12, %13 : vector<8x64xf32>
    %c0_12 = arith.constant 0 : index
    %c0_13 = arith.constant 0 : index
    %15 = vector.load %arg6[%c0_12, %c0_13] : memref<64x128xf32, #tpu.memory_space<vmem>>, vector<64x128xf32>
    %cst_14 = arith.constant dense<0.000000e+00> : vector<8x128xf32>
    %16 = tpu.matmul %14, %15, %cst_14 {dimension_numbers = #tpu.dot_dimension_numbers<[1], [0], [0], [1], [0, 0, 1, 1], [], []>} : vector<8x64xf32>, vector<64x128xf32>, vector<8x128xf32> -> vector<8x128xf32>
    %c0_15 = arith.constant 0 : index
    %c0_16 = arith.constant 0 : index
    %17 = vector.load %arg7[%c0_15, %c0_16] : memref<1x128xf32, #tpu.memory_space<vmem>>, vector<1x128xf32>
    %18 = vector.broadcast %17 : vector<1x128xf32> to vector<8x128xf32>
    %19 = arith.addf %16, %18 : vector<8x128xf32>
    %c0_17 = arith.constant 0 : index
    %c0_18 = arith.constant 0 : index
    %20 = vector.load %arg8[%c0_17, %c0_18] : memref<8x128xf32, #tpu.memory_space<vmem>>, vector<8x128xf32>
    tpu.vector_store %arg8[%c0_17, %c0_18], %19 {strides = array<i32>} : memref<8x128xf32, #tpu.memory_space<vmem>>, vector<8x128xf32>,
    return
  }
  func.func @transform_0(%arg0: i32) -> (i32, i32) {
    %c0_i32 = arith.constant 0 : i32
    %c0_i32_0 = arith.constant 0 : i32
    return %arg0, %c0_i32 : i32, i32
  }
  func.func @transform_1(%arg0: i32) -> (i32, i32) {
    %c0_i32 = arith.constant 0 : i32
    %c0_i32_0 = arith.constant 0 : i32
    %c0_i32_1 = arith.constant 0 : i32
    return %c0_i32, %c0_i32_0 : i32, i32
  }
  func.func @transform_2(%arg0: i32) -> (i32, i32) {
    %c0_i32 = arith.constant 0 : i32
    %c0_i32_0 = arith.constant 0 : i32
    %c0_i32_1 = arith.constant 0 : i32
    return %c0_i32, %c0_i32_0 : i32, i32
  }
  func.func @transform_3(%arg0: i32) -> (i32, i32) {
    %c0_i32 = arith.constant 0 : i32
    %c0_i32_0 = arith.constant 0 : i32
    %c0_i32_1 = arith.constant 0 : i32
    return %c0_i32, %c0_i32_0 : i32, i32
  }
  func.func @transform_4(%arg0: i32) -> (i32, i32) {
    %c0_i32 = arith.constant 0 : i32
    %c0_i32_0 = arith.constant 0 : i32
    %c0_i32_1 = arith.constant 0 : i32
    return %c0_i32, %c0_i32_0 : i32, i32
  }
  func.func @transform_5(%arg0: i32) -> (i32, i32) {
    %c0_i32 = arith.constant 0 : i32
    %c0_i32_0 = arith.constant 0 : i32
    %c0_i32_1 = arith.constant 0 : i32
    return %c0_i32, %c0_i32_0 : i32, i32
  }
  func.func @transform_6(%arg0: i32) -> (i32, i32) {
    %c0_i32 = arith.constant 0 : i32
    %c0_i32_0 = arith.constant 0 : i32
    %c0_i32_1 = arith.constant 0 : i32
    return %c0_i32, %c0_i32_0 : i32, i32
  }
  func.func @transform_7(%arg0: i32) -> (i32, i32) {
    %c0_i32 = arith.constant 0 : i32
    %c0_i32_0 = arith.constant 0 : i32
    return %arg0, %c0_i32 : i32, i32
  }
}

</mosaic_0001>

<llo_original>
// kernel: tpu_custom_call.1
$region0: #{tpu_custom_call.1}
  #allocation0 [shape = 'u32[]', space=smem, size = 0x4, offset = 0x4, fixed_abs, tag = 'smem constant byte address 0x4 - core index']
  #allocation1 [shape = 'u32[72,128]{1,0:T(1,128)}', space=vmem, size = 0x9000, scoped, tag = 'internal scratch']
  %s0 = inlined_call_operand.vmem [shape: f32[8,64], index: 0, kind: input, shape index: {}]
  %s1 = inlined_call_operand.vmem [shape: f32[64,128], index: 1, kind: input, shape index: {}]
  %s2 = inlined_call_operand.vmem [shape: f32[1,128], index: 2, kind: input, shape index: {}]
  %s3 = inlined_call_operand.vmem [shape: f32[128,64], index: 3, kind: input, shape index: {}]
  %s4 = inlined_call_operand.vmem [shape: f32[1,64], index: 4, kind: input, shape index: {}]
  %s5 = inlined_call_operand.vmem [shape: f32[64,128], index: 5, kind: input, shape index: {}]
  %s6 = inlined_call_operand.vmem [shape: f32[1,128], index: 6, kind: input, shape index: {}]
  %s7 = inlined_call_operand.hbm [shape: f32[8,128], index: 7, kind: output, shape index: {}]
  %s8 = sld [smem:[#allocation0]]
  $region38: #{tpu_custom_call.1} parent=0
    _
  %s10 = ssub.s32 1, %s8
  %s11 = scalar_select 0, %s10, %s8
  $region1: #{tpu_custom_call.1} parent=0
    #allocation2 [shape = 'u8[4096]{0}', space=vmem, size = 0x1000, scoped, tag = 'output window, operand 0, single buffered']
    #allocation3 [shape = 's32[1]{0}', space=sflag, size = 0x4, scoped, tag = 'scoped memory for tpu_custom_call.1']
    %12 = vsyncpa [#allocation3], 0
    // Predicated region
    $region2: #{tpu_custom_call.1} parent=1 // pred_check
      _
    $region3: #{tpu_custom_call.1} parent=1 // pred_check_branch
      %14 = sbr.rel (0) target = $region5
    $region4: #{tpu_custom_call.1} parent=1 // pred_region
      _
    $region5: #{tpu_custom_call.1} parent=1 // pred_fallthru
      _
    // Predicated region
    $region6: #{tpu_custom_call.1} parent=1 // pred_check
      _
    $region7: #{tpu_custom_call.1} parent=1 // pred_check_branch
      %16 = sbr.rel (0) target = $region9
    $region8: #{tpu_custom_call.1} parent=1 // pred_region
      _
    $region9: #{tpu_custom_call.1} parent=1 // pred_fallthru
      _
    // Predicated region
    $region10: #{tpu_custom_call.1} parent=1 // pred_check
      _
    $region11: #{tpu_custom_call.1} parent=1 // pred_check_branch
      %18 = sbr.rel (0) target = $region13
    $region12: #{tpu_custom_call.1} parent=1 // pred_region
      _
    $region13: #{tpu_custom_call.1} parent=1 // pred_fallthru
      _
    // Predicated region
    $region14: #{tpu_custom_call.1} parent=1 // pred_check
      _
    $region15: #{tpu_custom_call.1} parent=1 // pred_check_branch
      %20 = sbr.rel (0) target = $region17
    $region16: #{tpu_custom_call.1} parent=1 // pred_region
      _
    $region17: #{tpu_custom_call.1} parent=1 // pred_fallthru
      _
    // Predicated region
    $region18: #{tpu_custom_call.1} parent=1 // pred_check
      _
    $region19: #{tpu_custom_call.1} parent=1 // pred_check_branch
      %22 = sbr.rel (0) target = $region21
    $region20: #{tpu_custom_call.1} parent=1 // pred_region
      _
    $region21: #{tpu_custom_call.1} parent=1 // pred_fallthru
      _
    // Predicated region
    $region22: #{tpu_custom_call.1} parent=1 // pred_check
      _
    $region23: #{tpu_custom_call.1} parent=1 // pred_check_branch
      %24 = sbr.rel (0) target = $region25
    $region24: #{tpu_custom_call.1} parent=1 // pred_region
      _
    $region25: #{tpu_custom_call.1} parent=1 // pred_fallthru
      _
    // Predicated region
    $region26: #{tpu_custom_call.1} parent=1 // pred_check
      _
    $region27: #{tpu_custom_call.1} parent=1 // pred_check_branch
      %26 = sbr.rel (0) target = $region29
    $region28: #{tpu_custom_call.1} parent=1 // pred_region
      _
    $region29: #{tpu_custom_call.1} parent=1 // pred_fallthru
      _
    %v27 = vld [vmem:[%s0] sm:$0xff]
    %v28 = vld [vmem:[%s1] sm:$0xff]
    %v29 = vld [vmem:[%s1 + $0x8] sm:$0xff]
    %v30 = vld [vmem:[%s1 + $0x10] sm:$0xff]
    %v31 = vld [vmem:[%s1 + $0x18] sm:$0xff]
    %v32 = vld [vmem:[%s1 + $0x20] sm:$0xff]
    %v33 = vld [vmem:[%s1 + $0x28] sm:$0xff]
    %v34 = vld [vmem:[%s1 + $0x30] sm:$0xff]
    %v35 = vld [vmem:[%s1 + $0x38] sm:$0xff]
    %v36 = vld [vmem:[%s2] sm:$0x1]
    %v38 = vperm.slane %v36, 0
    %vm40 = vcmask 523264
    %v42 = vsel %vm40, %v27, 0
    %44 = vmatpush.msra.mxu0 0.0
    %45 = vmatpush.msra.mxu0 0.0
    %46 = vmatpush.msra.mxu0 0.0
    %47 = vmatpush.msra.mxu0 0.0
    %48 = vmatpush.msra.mxu0 0.0
    %49 = vmatpush.msra.mxu0 0.0
    %50 = vmatpush.msra.mxu0 0.0
    %51 = vmatpush.msra.mxu0 0.0
    %52 = vmatpush.msra.mxu0 %v35
    %53 = vmatpush.msra.mxu0 %v34
    %54 = vmatpush.msra.mxu0 %v33
    %55 = vmatpush.msra.mxu0 %v32
    %56 = vmatpush.msra.mxu0 %v31
    %57 = vmatpush.msra.mxu0 %v30
    %58 = vmatpush.msra.mxu0 %v29
    %59 = vmatpush.msra.mxu0 %v28
    %60 = vmatmul.f32.gmra.mxu0 %v42
    %v61 = vpop.f32.mrf.mxu0
    %v62 = vadd.f32 %v38, %v61
    %63 = vdwg.mxu0
    %v64 = vmax.f32 %v62, 0.0
    %v65 = vld [vmem:[%s3] sm:$0xff]
    %v66 = vld [vmem:[%s3 + $0x8] sm:$0xff]
    %v67 = vld [vmem:[%s3 + $0x10] sm:$0xff]
    %v68 = vld [vmem:[%s3 + $0x18] sm:$0xff]
    %v69 = vld [vmem:[%s3 + $0x20] sm:$0xff]
    %v70 = vld [vmem:[%s3 + $0x28] sm:$0xff]
    %v71 = vld [vmem:[%s3 + $0x30] sm:$0xff]
    %v72 = vld [vmem:[%s3 + $0x38] sm:$0xff]
    %v73 = vld [vmem:[%s3 + $0x40] sm:$0xff]
    %v74 = vld [vmem:[%s3 + $0x48] sm:$0xff]
    %v75 = vld [vmem:[%s3 + $0x50] sm:$0xff]
    %v76 = vld [vmem:[%s3 + $0x58] sm:$0xff]
    %v77 = vld [vmem:[%s3 + $0x60] sm:$0xff]
    %v78 = vld [vmem:[%s3 + $0x68] sm:$0xff]
    %v79 = vld [vmem:[%s3 + $0x70] sm:$0xff]
    %v80 = vld [vmem:[%s3 + $0x78] sm:$0xff]
    %v81 = vld [vmem:[%s4] sm:$0x1]
    %v83 = vperm.slane %v81, 0
    %85 = vmatpush.msra.mxu0 %v80
    %86 = vmatpush.msra.mxu0 %v79
    %87 = vmatpush.msra.mxu0 %v78
    %88 = vmatpush.msra.mxu0 %v77
    %89 = vmatpush.msra.mxu0 %v76
    %90 = vmatpush.msra.mxu0 %v75
    %91 = vmatpush.msra.mxu0 %v74
    %92 = vmatpush.msra.mxu0 %v73
    %93 = vmatpush.msra.mxu0 %v72
    %94 = vmatpush.msra.mxu0 %v71
    %95 = vmatpush.msra.mxu0 %v70
    %96 = vmatpush.msra.mxu0 %v69
    %97 = vmatpush.msra.mxu0 %v68
    %98 = vmatpush.msra.mxu0 %v67
    %99 = vmatpush.msra.mxu0 %v66
    %100 = vmatpush.msra.mxu0 %v65
    %101 = vmatmul.f32.gmra.mxu0 %v64
    %v102 = vpop.f32.mrf.mxu0
    %v103 = vadd.f32 %v83, %v102
    %104 = vdwg.mxu0
    %v105 = vmax.f32 %v103, 0.0
    %v106 = vld [vmem:[%s5] sm:$0xff]
    %v107 = vld [vmem:[%s5 + $0x8] sm:$0xff]
    %v108 = vld [vmem:[%s5 + $0x10] sm:$0xff]
    %v109 = vld [vmem:[%s5 + $0x18] sm:$0xff]
    %v110 = vld [vmem:[%s5 + $0x20] sm:$0xff]
    %v111 = vld [vmem:[%s5 + $0x28] sm:$0xff]
    %v112 = vld [vmem:[%s5 + $0x30] sm:$0xff]
    %v113 = vld [vmem:[%s5 + $0x38] sm:$0xff]
    %v114 = vld [vmem:[%s6] sm:$0x1]
    %v116 = vperm.slane %v114, 0
    %v119 = vsel %vm40, %v105, 0
    %121 = vmatpush.msra.mxu0 0.0
    %122 = vmatpush.msra.mxu0 0.0
    %123 = vmatpush.msra.mxu0 0.0
    %124 = vmatpush.msra.mxu0 0.0
    %125 = vmatpush.msra.mxu0 0.0
    %126 = vmatpush.msra.mxu0 0.0
    %127 = vmatpush.msra.mxu0 0.0
    %128 = vmatpush.msra.mxu0 0.0
    %129 = vmatpush.msra.mxu0 %v113
    %130 = vmatpush.msra.mxu0 %v112
    %131 = vmatpush.msra.mxu0 %v111
    %132 = vmatpush.msra.mxu0 %v110
    %133 = vmatpush.msra.mxu0 %v109
    %134 = vmatpush.msra.mxu0 %v108
    %135 = vmatpush.msra.mxu0 %v107
    %136 = vmatpush.msra.mxu0 %v106
    %137 = vmatmul.f32.gmra.mxu0 %v119
    %v138 = vpop.f32.mrf.mxu0
    %v139 = vadd.f32 %v116, %v138
    %140 = vdwg.mxu0
    %141 = vst [vmem:[#allocation2] sm:$0xff] %v139
    // Predicated region
    $region30: #{tpu_custom_call.1} parent=1 // pred_check
      _
    $region31: #{tpu_custom_call.1} parent=1 // pred_check_branch
      %143 = sbr.rel (0) target = $region33
    $region32: #{tpu_custom_call.1} parent=1 // pred_region
      %145 = vsyncadd [#allocation3], 0
      %s147 = sshll.u32 [#allocation2], 4
      %s148 = int_to_ptr.vmem [resolvable:$true] %s147
      %s149 = sshll.u32 %s7, 4
      %s150 = int_to_ptr.hbm [resolvable:$true] %s149
      %152 = dma.vmem_to_hbm [thread:$0]  %s148, 128, %s150, [#allocation3]
    $region33: #{tpu_custom_call.1} parent=1 // pred_fallthru
      _
    // Predicated region
    $region34: #{tpu_custom_call.1} parent=1 // pred_check
      _
    $region35: #{tpu_custom_call.1} parent=1 // pred_check_branch
      %154 = sbr.rel (0) target = $region37
    $region36: #{tpu_custom_call.1} parent=1 // pred_region
      %156 = dma.done [#allocation3], 128
    $region37: #{tpu_custom_call.1} parent=1 // pred_fallthru
      _
    %157 = vsyncpa [#allocation3], 1

</llo_original>
